<compile_context>
chip_gen: v5e
topology: v5e:2x2
jax: 0.10.0
libtpu: 0.0.40
codegen_flags: <defaults>
</compile_context>

<pallas_src>
import jax
import jax.numpy as jnp
from jax import lax
from jax.experimental import pallas as pl
from jax.experimental.pallas import tpu as pltpu


def _round_up(x, m):
    return ((x + m - 1) // m) * m


def _encoder_kernel(x_ref, xb_ref, w_ref, b_ref, o_ref):
    # x_ref : (Bb, stride, TL)   deinterleaved frames: x_ref[b, p, f] = x_pad[b, f*stride + p]
    # xb_ref: (Bb, stride, 128)  frames starting at the next tile (one-frame overlap)
    # w_ref : (C, K)             conv weight (in_channels dim squeezed)
    # b_ref : (C, 1)             bias
    # o_ref : (Bb, C, TL)        output tile, lane-dense along L
    Bb, stride, TL = x_ref.shape
    C, K = w_ref.shape

    xv = x_ref[...]                                          # frames l   .. l+TL-1
    xb = xb_ref[:, :, 0:1]                                   # frame  l+TL
    # frames[j][b, p, l] = x_pad[b, (l + j) * stride + p], j in {0, 1} since K == 2*stride
    x_next = jnp.concatenate([xv[:, :, 1:], xb], axis=-1)    # frames l+1 .. l+TL
    frames = (xv, x_next)

    w = w_ref[...]                                           # hoisted weight load (C, K)
    acc = jnp.zeros((Bb, C, TL), jnp.float32)
    for j in range(2):
        xj = frames[j]
        for p in range(stride):
            k = j * stride + p
            # (1, C, 1) * (Bb, 1, TL) -> (Bb, C, TL): broadcast FMA on the VPU.
            acc = acc + w[:, k:k + 1][None] * xj[:, p:p + 1, :]
    acc = acc + b_ref[...][None]
    o_ref[...] = jnp.maximum(acc, 0.0).astype(o_ref.dtype)


def encoder_forward(x, weight, bias, kernel_size, tile_l=16384):
    """x: (B, T) f32; weight: (C, 1, K) torch Conv1d layout; bias: (C,). Returns (B, C, L_out)."""
    assert x.ndim == 2
    K = int(kernel_size)
    # TODO(synk): odd kernel_size (K != 2*stride) would need a third frame shift; the
    # Conv-TasNet encoder uses even K, so only K == 2 * (K // 2) is handled here.
    assert K % 2 == 0 and K >= 2, "kernel_size must be even"
    stride = K // 2
    pad = K // 2
    B, T = x.shape
    C = weight.shape[0]

    L_out = (T + 2 * pad - K) // stride + 1

    # ---- Tile-size selection (step-overhead bound at small C -> use large lane tiles) ----
    fold_batch = B <= 8                # fold small batch into the block (grid over L only)
    Bb = B if fold_batch else 1

    tile_l = max(128, _round_up(int(tile_l), 128))           # always a lane multiple
    # Cap TL so double-buffered in/out tiles fit a ~32 MiB VMEM budget
    # (safe on v7x's 64 MiB VMEM; v5e/v6e have 128 MiB and simply run with headroom).
    vmem_budget = 32 * 1024 * 1024
    bytes_per_l = 2 * 4 * Bb * (C + stride)                  # 2 buffers x f32 x (out + in)
    tl_cap = max(128, (vmem_budget // bytes_per_l) // 128 * 128)
    TL = min(tile_l, tl_cap, _round_up(L_out, 128))
    # Prefer >= 2 L-tiles when there is enough work (v7x has 2 TensorCores per chip).
    if fold_batch and TL >= L_out and L_out > 256:
        TL = _round_up(pl.cdiv(L_out, 2), 128)
    n_tiles = pl.cdiv(L_out, TL)
    L_pad = n_tiles * TL
    tl_blocks = TL // 128

    # Extra 128 frames on the right so each tile's overlap view (a 128-frame block
    # starting at element offset (lt+1)*TL) is always in bounds.
    n_frames = L_pad + 128
    total_len = stride * n_frames

    # Single fused pad: conv zero-padding (left) + conv/alignment padding (right).
    extra_right = total_len - (T + pad)
    assert extra_right >= 0
    xp = jnp.pad(x, ((0, 0), (pad, extra_right)))            # (B, total_len)

    # Deinterleave into per-parity streams (no duplication, no materialized im2col):
    # x_deint[b, p, f] = xp[b, f*stride + p]
    x_deint = xp.reshape(B, n_frames, stride).transpose(0, 2, 1)   # (B, stride, n_frames)

    w = weight[:, 0, :].astype(jnp.float32)                  # (C, K)
    b = bias.reshape(C, 1).astype(jnp.float32)               # (C, 1)

    if fold_batch:
        grid = (n_tiles,)
        x_spec = pl.BlockSpec((B, stride, TL), lambda lt: (0, 0, lt))
        xb_spec = pl.BlockSpec((B, stride, 128), lambda lt: (0, 0, (lt + 1) * tl_blocks))
        w_spec = pl.BlockSpec((C, K), lambda lt: (0, 0))
        b_spec = pl.BlockSpec((C, 1), lambda lt: (0, 0))
        o_spec = pl.BlockSpec((B, C, TL), lambda lt: (0, 0, lt))
        dims = ("parallel",)
    else:
        grid = (B, n_tiles)
        x_spec = pl.BlockSpec((1, stride, TL), lambda bi, lt: (bi, 0, lt))
        xb_spec = pl.BlockSpec((1, stride, 128), lambda bi, lt: (bi, 0, (lt + 1) * tl_blocks))
        w_spec = pl.BlockSpec((C, K), lambda bi, lt: (0, 0))
        b_spec = pl.BlockSpec((C, 1), lambda bi, lt: (0, 0))
        o_spec = pl.BlockSpec((1, C, TL), lambda bi, lt: (bi, 0, lt))
        dims = ("parallel", "parallel")

    vmem_need = (2 * 4 * Bb * (C + stride) * TL
                 + 2 * 4 * Bb * stride * 128
                 + 4 * C * (K + 1))
    vmem_limit = min(48 * 1024 * 1024,
                     max(16 * 1024 * 1024, vmem_need * 3 // 2))

    out = pl.pallas_call(
        _encoder_kernel,
        out_shape=jax.ShapeDtypeStruct((B, C, L_pad), jnp.float32),
        grid=grid,
        in_specs=[x_spec, xb_spec, w_spec, b_spec],
        out_specs=o_spec,
        compiler_params=pltpu.CompilerParams(
            dimension_semantics=dims,
            vmem_limit_bytes=vmem_limit),
        cost_estimate=pl.CostEstimate(
            flops=2 * B * L_pad * K * C,
            transcendentals=0,
            bytes_accessed=4 * (B * stride * (L_pad + 128 * n_tiles)
                                + C * (K + 1) + B * C * L_pad)),
    )(x_deint, x_deint, w, b)

    if L_pad != L_out:
        out = out[:, :, :L_out]
    return out


def _reference_forward(x, weight, bias, kernel_size):
    """Pure-JAX reference using lax.conv (for verification)."""
    stride = kernel_size // 2
    pad = kernel_size // 2
    y = lax.conv_general_dilated(
        x[:, None, :],                # (B, 1, T)
        weight,                       # (C, 1, K)
        window_strides=(stride,),
        padding=[(pad, pad)],
        dimension_numbers=("NCH", "OIH", "NCH"),
    )
    y = y + bias[None, :, None]
    return jnp.maximum(y, 0.0)


if __name__ == "__main__":
    in_channels = 16   # C (Conv1d out_channels)
    kernel_size = 4    # K -> stride = 2, padding = 2
    B, T = 2, 64

    key = jax.random.PRNGKey(0)
    kx, kw, kb = jax.random.split(key, 3)

    # Deterministic param init mimicking nn.Conv1d default (uniform +-1/sqrt(fan_in)).
    fan_in = 1 * kernel_size
    bound = 1.0 / (fan_in ** 0.5)
    weight = jax.random.uniform(kw, (in_channels, 1, kernel_size),
                                minval=-bound, maxval=bound, dtype=jnp.float32)
    bias = jax.random.uniform(kb, (in_channels,),
                              minval=-bound, maxval=bound, dtype=jnp.float32)

    x = jax.random.normal(kx, (B, T), dtype=jnp.float32)

    y = encoder_forward(x, weight, bias, kernel_size)
    y = jax.block_until_ready(y)

    y_ref = _reference_forward(x, weight, bias, kernel_size)
    assert y.shape == y_ref.shape, (y.shape, y_ref.shape)
    assert jnp.allclose(y, y_ref, atol=1e-5, rtol=1e-5), "mismatch vs reference conv"

    print("KERNEL_OK")
</pallas_src>

<mosaic_0001>
module attributes {stable_mosaic.version = 11 : i64} {
  func.func @_encoder_kernel(%arg0: i32, %arg1: memref<2x2x128xf32, #tpu.memory_space<vmem>>, %arg2: memref<2x2x128xf32, #tpu.memory_space<vmem>>, %arg3: memref<16x4xf32, #tpu.memory_space<vmem>>, %arg4: memref<16x1xf32, #tpu.memory_space<vmem>>, %arg5: memref<2x16x128xf32, #tpu.memory_space<vmem>>) attributes {dimension_semantics = [#tpu.dimension_semantics<parallel>], iteration_bounds = array<i64: 1>, scalar_prefetch = 0 : i64, scratch_operands = 0 : i64, tpu.core_type = #tpu.core_type<tc>, window_params = [{transform_indices = @transform_0, window_bounds = array<i64: 2, 2, 128>}, {transform_indices = @transform_1, window_bounds = array<i64: 2, 2, 128>}, {pipeline_mode = #tpu.pipeline_mode<synchronous>, transform_indices = @transform_2, window_bounds = array<i64: 16, 4>}, {pipeline_mode = #tpu.pipeline_mode<synchronous>, transform_indices = @transform_3, window_bounds = array<i64: 16, 1>}, {transform_indices = @transform_4, window_bounds = array<i64: 2, 16, 128>}]} {
    %c0 = arith.constant 0 : index
    %c0_0 = arith.constant 0 : index
    %c0_1 = arith.constant 0 : index
    %0 = vector.load %arg1[%c0, %c0_0, %c0_1] : memref<2x2x128xf32, #tpu.memory_space<vmem>>, vector<2x2x128xf32>
    %c0_2 = arith.constant 0 : index
    %c0_3 = arith.constant 0 : index
    %c0_4 = arith.constant 0 : index
    %1 = vector.load %arg2[%c0_2, %c0_3, %c0_4] : memref<2x2x128xf32, #tpu.memory_space<vmem>>, vector<2x2x1xf32>
    %2 = vector.extract_strided_slice %0 {offsets = [0, 0, 1], sizes = [2, 2, 127], strides = [1, 1, 1]} : vector<2x2x128xf32> to vector<2x2x127xf32>
    %3 = tpu.concatenate %2, %1 in 2 : vector<2x2x127xf32>, vector<2x2x1xf32> -> vector<2x2x128xf32>
    %c0_5 = arith.constant 0 : index
    %c0_6 = arith.constant 0 : index
    %4 = vector.load %arg3[%c0_5, %c0_6] : memref<16x4xf32, #tpu.memory_space<vmem>>, vector<16x4xf32>
    %cst = arith.constant 0.000000e+00 : f32
    %5 = vector.broadcast %cst : f32 to vector<2x16x128xf32>
    %6 = vector.extract_strided_slice %4 {offsets = [0, 0], sizes = [16, 1], strides = [1, 1]} : vector<16x4xf32> to vector<16x1xf32>
    %7 = vector.shape_cast %6 : vector<16x1xf32> to vector<1x16x1xf32>
    %8 = vector.extract_strided_slice %0 {offsets = [0, 0, 0], sizes = [2, 1, 128], strides = [1, 1, 1]} : vector<2x2x128xf32> to vector<2x1x128xf32>
    %9 = vector.broadcast %7 : vector<1x16x1xf32> to vector<2x16x128xf32>
    %10 = vector.broadcast %8 : vector<2x1x128xf32> to vector<2x16x128xf32>
    %11 = arith.mulf %9, %10 : vector<2x16x128xf32>
    %12 = arith.addf %5, %11 : vector<2x16x128xf32>
    %13 = vector.extract_strided_slice %4 {offsets = [0, 1], sizes = [16, 1], strides = [1, 1]} : vector<16x4xf32> to vector<16x1xf32>
    %14 = vector.shape_cast %13 : vector<16x1xf32> to vector<1x16x1xf32>
    %15 = vector.extract_strided_slice %0 {offsets = [0, 1, 0], sizes = [2, 1, 128], strides = [1, 1, 1]} : vector<2x2x128xf32> to vector<2x1x128xf32>
    %16 = vector.broadcast %14 : vector<1x16x1xf32> to vector<2x16x128xf32>
    %17 = vector.broadcast %15 : vector<2x1x128xf32> to vector<2x16x128xf32>
    %18 = arith.mulf %16, %17 : vector<2x16x128xf32>
    %19 = arith.addf %12, %18 : vector<2x16x128xf32>
    %20 = vector.extract_strided_slice %4 {offsets = [0, 2], sizes = [16, 1], strides = [1, 1]} : vector<16x4xf32> to vector<16x1xf32>
    %21 = vector.shape_cast %20 : vector<16x1xf32> to vector<1x16x1xf32>
    %22 = vector.extract_strided_slice %3 {offsets = [0, 0, 0], sizes = [2, 1, 128], strides = [1, 1, 1]} : vector<2x2x128xf32> to vector<2x1x128xf32>
    %23 = vector.broadcast %21 : vector<1x16x1xf32> to vector<2x16x128xf32>
    %24 = vector.broadcast %22 : vector<2x1x128xf32> to vector<2x16x128xf32>
    %25 = arith.mulf %23, %24 : vector<2x16x128xf32>
    %26 = arith.addf %19, %25 : vector<2x16x128xf32>
    %27 = vector.extract_strided_slice %4 {offsets = [0, 3], sizes = [16, 1], strides = [1, 1]} : vector<16x4xf32> to vector<16x1xf32>
    %28 = vector.shape_cast %27 : vector<16x1xf32> to vector<1x16x1xf32>
    %29 = vector.extract_strided_slice %3 {offsets = [0, 1, 0], sizes = [2, 1, 128], strides = [1, 1, 1]} : vector<2x2x128xf32> to vector<2x1x128xf32>
    %30 = vector.broadcast %28 : vector<1x16x1xf32> to vector<2x16x128xf32>
    %31 = vector.broadcast %29 : vector<2x1x128xf32> to vector<2x16x128xf32>
    %32 = arith.mulf %30, %31 : vector<2x16x128xf32>
    %33 = arith.addf %26, %32 : vector<2x16x128xf32>
    %c0_7 = arith.constant 0 : index
    %c0_8 = arith.constant 0 : index
    %34 = vector.load %arg4[%c0_7, %c0_8] : memref<16x1xf32, #tpu.memory_space<vmem>>, vector<16x1xf32>
    %35 = vector.shape_cast %34 : vector<16x1xf32> to vector<1x16x1xf32>
    %36 = vector.broadcast %35 : vector<1x16x1xf32> to vector<2x16x128xf32>
    %37 = arith.addf %33, %36 : vector<2x16x128xf32>
    %cst_9 = arith.constant 0.000000e+00 : f32
    %38 = vector.broadcast %cst_9 : f32 to vector<2x16x128xf32>
    %39 = arith.maximumf %37, %38 : vector<2x16x128xf32>
    %c0_10 = arith.constant 0 : index
    %c0_11 = arith.constant 0 : index
    %c0_12 = arith.constant 0 : index
    %40 = vector.load %arg5[%c0_10, %c0_11, %c0_12] : memref<2x16x128xf32, #tpu.memory_space<vmem>>, vector<2x16x128xf32>
    tpu.vector_store %arg5[%c0_10, %c0_11, %c0_12], %39 {strides = array<i32>} : memref<2x16x128xf32, #tpu.memory_space<vmem>>, vector<2x16x128xf32>,
    return
  }
  func.func @transform_0(%arg0: i32) -> (i32, i32, i32) {
    %c0_i32 = arith.constant 0 : i32
    %c0_i32_0 = arith.constant 0 : i32
    %c0_i32_1 = arith.constant 0 : i32
    return %c0_i32, %c0_i32_0, %arg0 : i32, i32, i32
  }
  func.func @transform_1(%arg0: i32) -> (i32, i32, i32) {
    %c1_i32 = arith.constant 1 : i32
    %0 = arith.addi %arg0, %c1_i32 : i32
    %c1_i32_0 = arith.constant 1 : i32
    %1 = arith.muli %0, %c1_i32_0 : i32
    %c0_i32 = arith.constant 0 : i32
    %c0_i32_1 = arith.constant 0 : i32
    %c0_i32_2 = arith.constant 0 : i32
    return %c0_i32, %c0_i32_1, %1 : i32, i32, i32
  }
  func.func @transform_2(%arg0: i32) -> (i32, i32) {
    %c0_i32 = arith.constant 0 : i32
    %c0_i32_0 = arith.constant 0 : i32
    %c0_i32_1 = arith.constant 0 : i32
    return %c0_i32, %c0_i32_0 : i32, i32
  }
  func.func @transform_3(%arg0: i32) -> (i32, i32) {
    %c0_i32 = arith.constant 0 : i32
    %c0_i32_0 = arith.constant 0 : i32
    %c0_i32_1 = arith.constant 0 : i32
    return %c0_i32, %c0_i32_0 : i32, i32
  }
  func.func @transform_4(%arg0: i32) -> (i32, i32, i32) {
    %c0_i32 = arith.constant 0 : i32
    %c0_i32_0 = arith.constant 0 : i32
    %c0_i32_1 = arith.constant 0 : i32
    return %c0_i32, %c0_i32_0, %arg0 : i32, i32, i32
  }
}

</mosaic_0001>

<llo_original>
// kernel: tpu_custom_call.1
$region0: #{tpu_custom_call.1}
  #allocation0 [shape = 'u32[]', space=smem, size = 0x4, offset = 0x4, fixed_abs, tag = 'smem constant byte address 0x4 - core index']
  #allocation1 [shape = 'u32[72,128]{1,0:T(1,128)}', space=vmem, size = 0x9000, scoped, tag = 'internal scratch']
  %s0 = inlined_call_operand.vmem [shape: f32[2,2,256], index: 0, kind: input, shape index: {}]
  %s1 = inlined_call_operand.vmem [shape: f32[2,2,256], index: 1, kind: input, shape index: {}]
  %s2 = inlined_call_operand.vmem [shape: f32[16,4], index: 2, kind: input, shape index: {}]
  %s3 = inlined_call_operand.vmem [shape: f32[16,1], index: 3, kind: input, shape index: {}]
  %s4 = inlined_call_operand.hbm [shape: f32[2,16,128], index: 4, kind: output, shape index: {}]
  %s5 = sld [smem:[#allocation0]]
  $region94: #{tpu_custom_call.1} parent=0
    _
  %s7 = ssub.s32 1, %s5
  %s8 = scalar_select 0, %s7, %s5
  $region1: #{tpu_custom_call.1} parent=0
    #allocation2 [shape = 'u8[2048]{0}', space=vmem, size = 0x800, scoped, tag = 'input window, operand 0, single buffered']
    #allocation3 [shape = 'u8[2048]{0}', space=vmem, size = 0x800, scoped, tag = 'input window, operand 1, single buffered']
    #allocation4 [shape = 'u8[16384]{0}', space=vmem, size = 0x4000, scoped, tag = 'output window, operand 0, single buffered']
    #allocation5 [shape = 's32[1]{0}', space=sflag, size = 0x4, scoped, tag = 'scoped memory for tpu_custom_call.1']
    %9 = vsyncpa [#allocation5], 0
    // Predicated region
    $region2: #{tpu_custom_call.1} parent=1 // pred_check
      _
    $region3: #{tpu_custom_call.1} parent=1 // pred_check_branch
      %11 = sbr.rel (0) target = $region5
    $region4: #{tpu_custom_call.1} parent=1 // pred_region
      // Predicated region
      $region6: #{tpu_custom_call.1} parent=4 // pred_check
        _
      $region7: #{tpu_custom_call.1} parent=4 // pred_check_branch
        %13 = sbr.rel (0) target = $region9
      $region8: #{tpu_custom_call.1} parent=4 // pred_region
        // Predicated region
        $region10: #{tpu_custom_call.1} parent=8 // pred_check
          _
        $region11: #{tpu_custom_call.1} parent=8 // pred_check_branch
          %15 = sbr.rel target = $region13
        $region12: #{tpu_custom_call.1} parent=8 // pred_region
          // Predicated region
          $region25: #{tpu_custom_call.1} parent=12 // pred_check
            _
          $region26: #{tpu_custom_call.1} parent=12 // pred_check_branch
            %33 = sbr.rel (0) target = $region28
          $region27: #{tpu_custom_call.1} parent=12 // pred_region
            %s35 = ssub.s32 4, 1
            loop: start=0, step=1, limit=1
            $region29: #{tpu_custom_call.1} parent=27 // loop_pre_header
              _
            $region30: #{tpu_custom_call.1} parent=27 // loop_header
              %s37 = sphi 0, %s41
              %p38 = scmp.ge.s32.totalorder %s37, 1
              %s42 = sphi %s0, %s0
              %s43 = sphi [#allocation2], [#allocation2]
            $region31: #{tpu_custom_call.1} parent=27 // loop_header_branch
              %40 = sbr.rel (%p38) target = $region35
            $region32: #{tpu_custom_call.1} parent=27 // loop_body
              %v44 = vld [vmem:[%s42] sm:%s35]
              %45 = vst [vmem:[%s43] sm:%s35] %v44
              %v46 = vld [vmem:[%s42 + $0x4] sm:%s35]
              %47 = vst [vmem:[%s43 + $0x2] sm:%s35] %v46
            $region33: #{tpu_custom_call.1} parent=27 // loop_footer
              %s41 = sadd.s32 1, %s37
            $region34: #{tpu_custom_call.1} parent=27 // loop_footer_branch
              %36 = sbr.rel target = $region30
            $region35: #{tpu_custom_call.1} parent=27 // loop_exit
              _
          $region28: #{tpu_custom_call.1} parent=12 // pred_fallthru
            _
        $region13: #{tpu_custom_call.1} parent=8 // pred_fallthru
          _
        // Predicated region
        $region14: #{tpu_custom_call.1} parent=8 // pred_check
          _
        $region15: #{tpu_custom_call.1} parent=8 // pred_check_branch
          %17 = sbr.rel (0) target = $region17
        $region16: #{tpu_custom_call.1} parent=8 // pred_region
          %s19 = ssub.s32 4, 1
          loop: start=0, step=1, limit=1
          $region18: #{tpu_custom_call.1} parent=16 // loop_pre_header
            _
          $region19: #{tpu_custom_call.1} parent=16 // loop_header
            %s21 = sphi 0, %s25
            %p22 = scmp.ge.s32.totalorder %s21, 1
            %s26 = sphi %s0, %s0
            %s27 = sphi [#allocation2], [#allocation2]
          $region20: #{tpu_custom_call.1} parent=16 // loop_header_branch
            %24 = sbr.rel (%p22) target = $region24
          $region21: #{tpu_custom_call.1} parent=16 // loop_body
            %v28 = vld [vmem:[%s26] sm:%s19]
            %29 = vst [vmem:[%s27] sm:%s19] %v28
            %v30 = vld [vmem:[%s26 + $0x4] sm:%s19]
            %31 = vst [vmem:[%s27 + $0x2] sm:%s19] %v30
          $region22: #{tpu_custom_call.1} parent=16 // loop_footer
            %s25 = sadd.s32 1, %s21
          $region23: #{tpu_custom_call.1} parent=16 // loop_footer_branch
            %20 = sbr.rel target = $region19
          $region24: #{tpu_custom_call.1} parent=16 // loop_exit
            _
        $region17: #{tpu_custom_call.1} parent=8 // pred_fallthru
          _
      $region9: #{tpu_custom_call.1} parent=4 // pred_fallthru
        _
      %48 = vnop
    $region5: #{tpu_custom_call.1} parent=1 // pred_fallthru
      _
    // Predicated region
    $region36: #{tpu_custom_call.1} parent=1 // pred_check
      _
    $region37: #{tpu_custom_call.1} parent=1 // pred_check_branch
      %50 = sbr.rel (0) target = $region39
    $region38: #{tpu_custom_call.1} parent=1 // pred_region
      %s51 = sadd.s32 0, 1
      %s52 = smul.addr %s51, 2
      %s53 = scalar_lea.vmem %s1, %s52
      // Predicated region
      $region40: #{tpu_custom_call.1} parent=38 // pred_check
        _
      $region41: #{tpu_custom_call.1} parent=38 // pred_check_branch
        %55 = sbr.rel (0) target = $region43
      $region42: #{tpu_custom_call.1} parent=38 // pred_region
        // Predicated region
        $region44: #{tpu_custom_call.1} parent=42 // pred_check
          _
        $region45: #{tpu_custom_call.1} parent=42 // pred_check_branch
          %57 = sbr.rel target = $region47
        $region46: #{tpu_custom_call.1} parent=42 // pred_region
          // Predicated region
          $region59: #{tpu_custom_call.1} parent=46 // pred_check
            _
          $region60: #{tpu_custom_call.1} parent=46 // pred_check_branch
            %75 = sbr.rel (0) target = $region62
          $region61: #{tpu_custom_call.1} parent=46 // pred_region
            %s77 = ssub.s32 4, 1
            loop: start=0, step=1, limit=1
            $region63: #{tpu_custom_call.1} parent=61 // loop_pre_header
              _
            $region64: #{tpu_custom_call.1} parent=61 // loop_header
              %s79 = sphi 0, %s83
              %p80 = scmp.ge.s32.totalorder %s79, 1
              %s84 = sphi %s53, %s53
              %s85 = sphi [#allocation3], [#allocation3]
            $region65: #{tpu_custom_call.1} parent=61 // loop_header_branch
              %82 = sbr.rel (%p80) target = $region69
            $region66: #{tpu_custom_call.1} parent=61 // loop_body
              %v86 = vld [vmem:[%s84] sm:%s77]
              %87 = vst [vmem:[%s85] sm:%s77] %v86
              %v88 = vld [vmem:[%s84 + $0x4] sm:%s77]
              %89 = vst [vmem:[%s85 + $0x2] sm:%s77] %v88
            $region67: #{tpu_custom_call.1} parent=61 // loop_footer
              %s83 = sadd.s32 1, %s79
            $region68: #{tpu_custom_call.1} parent=61 // loop_footer_branch
              %78 = sbr.rel target = $region64
            $region69: #{tpu_custom_call.1} parent=61 // loop_exit
              _
          $region62: #{tpu_custom_call.1} parent=46 // pred_fallthru
            _
        $region47: #{tpu_custom_call.1} parent=42 // pred_fallthru
          _
        // Predicated region
        $region48: #{tpu_custom_call.1} parent=42 // pred_check
          _
        $region49: #{tpu_custom_call.1} parent=42 // pred_check_branch
          %59 = sbr.rel (0) target = $region51
        $region50: #{tpu_custom_call.1} parent=42 // pred_region
          %s61 = ssub.s32 4, 1
          loop: start=0, step=1, limit=1
          $region52: #{tpu_custom_call.1} parent=50 // loop_pre_header
            _
          $region53: #{tpu_custom_call.1} parent=50 // loop_header
            %s63 = sphi 0, %s67
            %p64 = scmp.ge.s32.totalorder %s63, 1
            %s68 = sphi %s53, %s53
            %s69 = sphi [#allocation3], [#allocation3]
          $region54: #{tpu_custom_call.1} parent=50 // loop_header_branch
            %66 = sbr.rel (%p64) target = $region58
          $region55: #{tpu_custom_call.1} parent=50 // loop_body
            %v70 = vld [vmem:[%s68] sm:%s61]
            %71 = vst [vmem:[%s69] sm:%s61] %v70
            %v72 = vld [vmem:[%s68 + $0x4] sm:%s61]
            %73 = vst [vmem:[%s69 + $0x2] sm:%s61] %v72
          $region56: #{tpu_custom_call.1} parent=50 // loop_footer
            %s67 = sadd.s32 1, %s63
          $region57: #{tpu_custom_call.1} parent=50 // loop_footer_branch
            %62 = sbr.rel target = $region53
          $region58: #{tpu_custom_call.1} parent=50 // loop_exit
            _
        $region51: #{tpu_custom_call.1} parent=42 // pred_fallthru
          _
      $region43: #{tpu_custom_call.1} parent=38 // pred_fallthru
        _
      %90 = vnop
    $region39: #{tpu_custom_call.1} parent=1 // pred_fallthru
      _
    // Predicated region
    $region70: #{tpu_custom_call.1} parent=1 // pred_check
      _
    $region71: #{tpu_custom_call.1} parent=1 // pred_check_branch
      %92 = sbr.rel (0) target = $region73
    $region72: #{tpu_custom_call.1} parent=1 // pred_region
      _
    $region73: #{tpu_custom_call.1} parent=1 // pred_fallthru
      _
    // Predicated region
    $region74: #{tpu_custom_call.1} parent=1 // pred_check
      _
    $region75: #{tpu_custom_call.1} parent=1 // pred_check_branch
      %94 = sbr.rel (0) target = $region77
    $region76: #{tpu_custom_call.1} parent=1 // pred_region
      _
    $region77: #{tpu_custom_call.1} parent=1 // pred_fallthru
      _
    // Predicated region
    $region78: #{tpu_custom_call.1} parent=1 // pred_check
      _
    $region79: #{tpu_custom_call.1} parent=1 // pred_check_branch
      %96 = sbr.rel (0) target = $region81
    $region80: #{tpu_custom_call.1} parent=1 // pred_region
      _
    $region81: #{tpu_custom_call.1} parent=1 // pred_fallthru
      _
    // Predicated region
    $region82: #{tpu_custom_call.1} parent=1 // pred_check
      _
    $region83: #{tpu_custom_call.1} parent=1 // pred_check_branch
      %98 = sbr.rel (0) target = $region85
    $region84: #{tpu_custom_call.1} parent=1 // pred_region
      _
    $region85: #{tpu_custom_call.1} parent=1 // pred_fallthru
      _
    %s99 = sadd.s32 0, 1
    %v100 = vld [vmem:[#allocation2] sm:$0x3]
    %v101 = vld [vmem:[#allocation2 + $0x2] sm:$0x3]
    %v102 = vld [vmem:[#allocation3] sm:$0x3]
    %v103 = vld [vmem:[#allocation3 + $0x2] sm:$0x3]
    %106 = vrot.lane.b32.xlu0 %v100, 127
    %v107 = vpop.permute.xlu0 %106
    %108 = vrot.lane.b32.xlu0 %v101, 127
    %v109 = vpop.permute.xlu0 %108
    %114 = vrot.lane.b32.xlu0 %v102, 127
    %v115 = vpop.permute.xlu0 %114
    %116 = vrot.lane.b32.xlu0 %v103, 127
    %v117 = vpop.permute.xlu0 %116
    %vm120 = vcmask 1039360
    %v121 = vsel %vm120, %v107, %v115
    %v122 = vsel %vm120, %v109, %v117
    %v123 = vld [vmem:[%s2] sm:$0xff]
    %v124 = vld [vmem:[%s2 + $0x8] sm:$0xff]
    %126 = vset.pattern.permute.xlu0 0
    %127 = vperm.xlu0 %126, %v123
    %v128 = vpop.permute.xlu0 %127
    %131 = vset.pattern.permute.xlu0 0
    %132 = vperm.xlu0 %131, %v124
    %v133 = vpop.permute.xlu0 %132
    %v135 = vperm.slane %v100, 0
    %v136 = vperm.slane %v101, 0
    %v137 = vmul.f32 %v128, %v135
    %v138 = vmul.f32 %v133, %v135
    %v139 = vmul.f32 %v128, %v136
    %v140 = vmul.f32 %v133, %v136
    %v141 = vadd.f32 %v137, 0.0
    %v142 = vadd.f32 %v138, 0.0
    %v143 = vadd.f32 %v139, 0.0
    %v144 = vadd.f32 %v140, 0.0
    %145 = vset.pattern.permute.xlu0 1
    %146 = vperm.xlu0 %145, %v123
    %v147 = vpop.permute.xlu0 %146
    %149 = vset.pattern.permute.xlu0 1
    %150 = vperm.xlu0 %149, %v124
    %v151 = vpop.permute.xlu0 %150
    %v153 = vperm.slane %v100, 1
    %v154 = vperm.slane %v101, 1
    %v155 = vmul.f32 %v147, %v153
    %v156 = vmul.f32 %v151, %v153
    %v157 = vmul.f32 %v147, %v154
    %v158 = vmul.f32 %v151, %v154
    %v159 = vadd.f32 %v141, %v155
    %v160 = vadd.f32 %v142, %v156
    %v161 = vadd.f32 %v143, %v157
    %v162 = vadd.f32 %v144, %v158
    %163 = vset.pattern.permute.xlu0 2
    %164 = vperm.xlu0 %163, %v123
    %v165 = vpop.permute.xlu0 %164
    %167 = vset.pattern.permute.xlu0 2
    %168 = vperm.xlu0 %167, %v124
    %v169 = vpop.permute.xlu0 %168
    %v171 = vperm.slane %v121, 0
    %v172 = vperm.slane %v122, 0
    %v173 = vmul.f32 %v165, %v171
    %v174 = vmul.f32 %v169, %v171
    %v175 = vmul.f32 %v165, %v172
    %v176 = vmul.f32 %v169, %v172
    %v177 = vadd.f32 %v159, %v173
    %v178 = vadd.f32 %v160, %v174
    %v179 = vadd.f32 %v161, %v175
    %v180 = vadd.f32 %v162, %v176
    %181 = vset.pattern.permute.xlu0 3
    %182 = vperm.xlu0 %181, %v123
    %v183 = vpop.permute.xlu0 %182
    %185 = vset.pattern.permute.xlu0 3
    %186 = vperm.xlu0 %185, %v124
    %v187 = vpop.permute.xlu0 %186
    %v189 = vperm.slane %v121, 1
    %v190 = vperm.slane %v122, 1
    %v191 = vmul.f32 %v183, %v189
    %v192 = vmul.f32 %v187, %v189
    %v193 = vmul.f32 %v183, %v190
    %v194 = vmul.f32 %v187, %v190
    %v195 = vadd.f32 %v177, %v191
    %v196 = vadd.f32 %v178, %v192
    %v197 = vadd.f32 %v179, %v193
    %v198 = vadd.f32 %v180, %v194
    %v199 = vld [vmem:[%s3] sm:$0xff]
    %v200 = vld [vmem:[%s3 + $0x8] sm:$0xff]
    %202 = vset.pattern.permute.xlu0 0
    %203 = vperm.xlu0 %202, %v199
    %v204 = vpop.permute.xlu0 %203
    %207 = vset.pattern.permute.xlu0 0
    %208 = vperm.xlu0 %207, %v200
    %v209 = vpop.permute.xlu0 %208
    %v211 = vadd.f32 %v195, %v204
    %v212 = vadd.f32 %v196, %v209
    %v213 = vadd.f32 %v197, %v204
    %v214 = vadd.f32 %v198, %v209
    %v215 = vmax.f32 %v211, 0.0
    %v216 = vmax.f32 %v212, 0.0
    %v217 = vmax.f32 %v213, 0.0
    %v218 = vmax.f32 %v214, 0.0
    %219 = vst [vmem:[#allocation4] sm:$0xff] %v215
    %220 = vst [vmem:[#allocation4 + $0x8] sm:$0xff] %v216
    %221 = vst [vmem:[#allocation4 + $0x10] sm:$0xff] %v217
    %222 = vst [vmem:[#allocation4 + $0x18] sm:$0xff] %v218
    // Predicated region
    $region86: #{tpu_custom_call.1} parent=1 // pred_check
      _
    $region87: #{tpu_custom_call.1} parent=1 // pred_check_branch
      %224 = sbr.rel (0) target = $region89
    $region88: #{tpu_custom_call.1} parent=1 // pred_region
      %226 = vsyncadd [#allocation5], 0
      %s227 = sshll.u32 [#allocation4], 4
      %s228 = int_to_ptr.vmem [resolvable:$true] %s227
      %s229 = sshll.u32 %s4, 4
      %s230 = int_to_ptr.hbm [resolvable:$true] %s229
      %235 = dma.vmem_to_hbm [thread:$0]  %s228, 512, %s230, [#allocation5], 128, 128, 8
    $region89: #{tpu_custom_call.1} parent=1 // pred_fallthru
      _
    // Predicated region
    $region90: #{tpu_custom_call.1} parent=1 // pred_check
      _
    $region91: #{tpu_custom_call.1} parent=1 // pred_check_branch
      %237 = sbr.rel (0) target = $region93
    $region92: #{tpu_custom_call.1} parent=1 // pred_region
      %239 = dma.done [#allocation5], 512
    $region93: #{tpu_custom_call.1} parent=1 // pred_fallthru
      _
    %240 = vsyncpa [#allocation5], 1

</llo_original>
